<compile_context>
chip_gen: v6e
topology: v6e:2x2x1
jax: 0.10.0
libtpu: 0.0.40
codegen_flags: <defaults>
</compile_context>

<pallas_src>
import jax
import jax.numpy as jnp
from jax.experimental import pallas as pl
from jax.experimental.pallas import tpu as pltpu

FEATURE_SIZE = 169
HIDDEN_SIZE = 32
OUTPUT_SIZE = 10


def _rnn_recurrence_kernel(xw_ref, h0_ref, whh_ref, wl_ref, bl_ref,
                           out_ref, hfin_ref):
    """Single-invocation kernel: serial tanh recurrence + final linear.

    xw_ref  : (S, B, H)  precomputed x @ W_ih^T + (b_ih + b_hh), time-major
    h0_ref  : (B, H)     initial hidden state
    whh_ref : (H, H)     hidden->hidden weight (transposed, so h @ W)
    wl_ref  : (H, O)     linear weight (transposed)
    bl_ref  : (1, O)     linear bias
    out_ref : (B, O)     linear output on the last hidden state
    hfin_ref: (B, H)     final hidden state
    """
    seq_len = xw_ref.shape[0]            # static
    whh = whh_ref[...]                   # hoisted out of the loop

    def step(t, h):
        # Serial floor per timestep: one (B,H)@(H,H) MXU matmul + EUP tanh.
        return jnp.tanh(
            xw_ref[t]
            + jnp.dot(h, whh, preferred_element_type=jnp.float32)
        )

    h_last = jax.lax.fori_loop(0, seq_len, step, h0_ref[...], unroll=True)

    hfin_ref[...] = h_last
    out_ref[...] = (
        jnp.dot(h_last, wl_ref[...], preferred_element_type=jnp.float32)
        + bl_ref[...]
    )


def rnn_forward(x, h_prev, params):
    """x: (B, S, F) batch-first, h_prev: (1, B, H). Returns (out (B, O), hidden (1, B, H))."""
    B, S, F = x.shape
    H = HIDDEN_SIZE
    O = OUTPUT_SIZE

    w_ih_t = params["w_ih"].T                      # (F, H)
    w_hh_t = params["w_hh"].T                      # (H, H)
    w_l_t = params["w_lin"].T                      # (H, O)
    b_l = params["b_lin"].reshape(1, O)            # (1, O)
    bias = params["b_ih"] + params["b_hh"]         # (H,)

    # Hoisted input projection: one well-shaped (S*B, 169) x (169, 32) matmul in
    # XLA (MXU-friendly M = S*B instead of M = B), output time-major with the
    # combined RNN bias folded in.
    xw = jnp.einsum("bsf,fh->sbh", x, w_ih_t) + bias   # (S, B, H), float32

    h0 = h_prev[0]                                 # (B, H)

    grid_spec = pltpu.PrefetchScalarGridSpec(
        num_scalar_prefetch=0,
        grid=(1,),                                  # whole recurrence in one invocation
        in_specs=[
            pl.BlockSpec((S, B, H), lambda i: (0, 0, 0)),   # xw (tiny; fits VMEM)
            pl.BlockSpec((B, H), lambda i: (0, 0)),          # h0
            pl.BlockSpec((H, H), lambda i: (0, 0)),          # W_hh^T
            pl.BlockSpec((H, O), lambda i: (0, 0)),          # W_lin^T
            pl.BlockSpec((1, O), lambda i: (0, 0)),          # b_lin
        ],
        out_specs=[
            pl.BlockSpec((B, O), lambda i: (0, 0)),          # linear output
            pl.BlockSpec((B, H), lambda i: (0, 0)),          # final hidden
        ],
    )

    out, h_fin = pl.pallas_call(
        _rnn_recurrence_kernel,
        out_shape=(
            jax.ShapeDtypeStruct((B, O), jnp.float32),
            jax.ShapeDtypeStruct((B, H), jnp.float32),
        ),
        grid_spec=grid_spec,
        compiler_params=pltpu.CompilerParams(
            dimension_semantics=("arbitrary",),
        ),
    )(xw, h0, w_hh_t, w_l_t, b_l)

    return out, h_fin[None]


def rnn_reference(x, h_prev, params):
    """Pure-JAX reference matching torch.nn.RNN(tanh) + Linear semantics."""
    w_ih, w_hh = params["w_ih"], params["w_hh"]
    b_ih, b_hh = params["b_ih"], params["b_hh"]

    def step(h, x_t):
        h_new = jnp.tanh(x_t @ w_ih.T + b_ih + h @ w_hh.T + b_hh)
        return h_new, h_new

    h0 = h_prev[0]                                     # (B, H)
    x_tm = jnp.transpose(x, (1, 0, 2))                 # (S, B, F)
    h_last, _ = jax.lax.scan(step, h0, x_tm)
    out = h_last @ params["w_lin"].T + params["b_lin"]
    return out, h_last[None]


def init_params(key):
    k = jax.random.split(key, 6)
    # RNN params: normal(0, 0.001) as in the PyTorch __init__.
    w_ih = 0.001 * jax.random.normal(k[0], (HIDDEN_SIZE, FEATURE_SIZE), jnp.float32)
    w_hh = 0.001 * jax.random.normal(k[1], (HIDDEN_SIZE, HIDDEN_SIZE), jnp.float32)
    b_ih = 0.001 * jax.random.normal(k[2], (HIDDEN_SIZE,), jnp.float32)
    b_hh = 0.001 * jax.random.normal(k[3], (HIDDEN_SIZE,), jnp.float32)
    # Linear params: uniform init with the torch-default bound.
    bound = 1.0 / (HIDDEN_SIZE ** 0.5)
    w_lin = jax.random.uniform(k[4], (OUTPUT_SIZE, HIDDEN_SIZE), jnp.float32, -bound, bound)
    b_lin = jax.random.uniform(k[5], (OUTPUT_SIZE,), jnp.float32, -bound, bound)
    return dict(w_ih=w_ih, w_hh=w_hh, b_ih=b_ih, b_hh=b_hh, w_lin=w_lin, b_lin=b_lin)


if __name__ == "__main__":
    key = jax.random.PRNGKey(0)
    kp, kx, kh = jax.random.split(key, 3)

    B, S = 2, 8
    params = init_params(kp)
    x = jax.random.normal(kx, (B, S, FEATURE_SIZE), jnp.float32)
    h_prev = jax.random.normal(kh, (1, B, HIDDEN_SIZE), jnp.float32)

    rnn_forward_jit = jax.jit(rnn_forward)
    out, h_fin = rnn_forward_jit(x, h_prev, params)
    out = jax.block_until_ready(out)
    h_fin = jax.block_until_ready(h_fin)

    out_ref, h_ref = rnn_reference(x, h_prev, params)
    assert out.shape == (B, OUTPUT_SIZE) and h_fin.shape == (1, B, HIDDEN_SIZE)
    assert jnp.allclose(out, out_ref, atol=1e-5, rtol=1e-5)
    assert jnp.allclose(h_fin, h_ref, atol=1e-5, rtol=1e-5)

    print("KERNEL_OK")
</pallas_src>

<mosaic_0001>
module attributes {stable_mosaic.version = 11 : i64} {
  func.func @_rnn_recurrence_kernel(%arg0: i32, %arg1: memref<8x2x32xf32, #tpu.memory_space<vmem>>, %arg2: memref<2x32xf32, #tpu.memory_space<vmem>>, %arg3: memref<32x32xf32, #tpu.memory_space<vmem>>, %arg4: memref<32x10xf32, #tpu.memory_space<vmem>>, %arg5: memref<1x10xf32, #tpu.memory_space<vmem>>, %arg6: memref<2x10xf32, #tpu.memory_space<vmem>>, %arg7: memref<2x32xf32, #tpu.memory_space<vmem>>) attributes {dimension_semantics = [#tpu.dimension_semantics<arbitrary>], iteration_bounds = array<i64: 1>, scalar_prefetch = 0 : i64, scratch_operands = 0 : i64, tpu.core_type = #tpu.core_type<tc>, window_params = [{pipeline_mode = #tpu.pipeline_mode<synchronous>, transform_indices = @transform_0, window_bounds = array<i64: 8, 2, 32>}, {pipeline_mode = #tpu.pipeline_mode<synchronous>, transform_indices = @transform_1, window_bounds = array<i64: 2, 32>}, {pipeline_mode = #tpu.pipeline_mode<synchronous>, transform_indices = @transform_2, window_bounds = array<i64: 32, 32>}, {pipeline_mode = #tpu.pipeline_mode<synchronous>, transform_indices = @transform_3, window_bounds = array<i64: 32, 10>}, {pipeline_mode = #tpu.pipeline_mode<synchronous>, transform_indices = @transform_4, window_bounds = array<i64: 1, 10>}, {pipeline_mode = #tpu.pipeline_mode<synchronous>, transform_indices = @transform_5, window_bounds = array<i64: 2, 10>}, {pipeline_mode = #tpu.pipeline_mode<synchronous>, transform_indices = @transform_6, window_bounds = array<i64: 2, 32>}]} {
    %c0 = arith.constant 0 : index
    %c0_0 = arith.constant 0 : index
    %0 = vector.load %arg3[%c0, %c0_0] : memref<32x32xf32, #tpu.memory_space<vmem>>, vector<32x32xf32>
    %c0_1 = arith.constant 0 : index
    %c0_2 = arith.constant 0 : index
    %1 = vector.load %arg2[%c0_1, %c0_2] : memref<2x32xf32, #tpu.memory_space<vmem>>, vector<2x32xf32>
    %c0_i32 = arith.constant 0 : i32
    %2 = arith.index_cast %c0_i32 : i32 to index
    %c0_3 = arith.constant 0 : index
    %c0_4 = arith.constant 0 : index
    %3 = vector.load %arg1[%2, %c0_3, %c0_4] : memref<8x2x32xf32, #tpu.memory_space<vmem>>, vector<1x2x32xf32>
    %4 = vector.shape_cast %3 : vector<1x2x32xf32> to vector<2x32xf32>
    %cst = arith.constant dense<0.000000e+00> : vector<2x32xf32>
    %5 = tpu.matmul %1, %0, %cst {dimension_numbers = #tpu.dot_dimension_numbers<[1], [0], [0], [1], [0, 0, 1, 1], [], []>} : vector<2x32xf32>, vector<32x32xf32>, vector<2x32xf32> -> vector<2x32xf32>
    %6 = arith.addf %4, %5 : vector<2x32xf32>
    %7 = math.tanh %6 : vector<2x32xf32>
    %c1_i32 = arith.constant 1 : i32
    %8 = arith.index_cast %c1_i32 : i32 to index
    %c0_5 = arith.constant 0 : index
    %c0_6 = arith.constant 0 : index
    %9 = vector.load %arg1[%8, %c0_5, %c0_6] : memref<8x2x32xf32, #tpu.memory_space<vmem>>, vector<1x2x32xf32>
    %10 = vector.shape_cast %9 : vector<1x2x32xf32> to vector<2x32xf32>
    %cst_7 = arith.constant dense<0.000000e+00> : vector<2x32xf32>
    %11 = tpu.matmul %7, %0, %cst_7 {dimension_numbers = #tpu.dot_dimension_numbers<[1], [0], [0], [1], [0, 0, 1, 1], [], []>} : vector<2x32xf32>, vector<32x32xf32>, vector<2x32xf32> -> vector<2x32xf32>
    %12 = arith.addf %10, %11 : vector<2x32xf32>
    %13 = math.tanh %12 : vector<2x32xf32>
    %c2_i32 = arith.constant 2 : i32
    %14 = arith.index_cast %c2_i32 : i32 to index
    %c0_8 = arith.constant 0 : index
    %c0_9 = arith.constant 0 : index
    %15 = vector.load %arg1[%14, %c0_8, %c0_9] : memref<8x2x32xf32, #tpu.memory_space<vmem>>, vector<1x2x32xf32>
    %16 = vector.shape_cast %15 : vector<1x2x32xf32> to vector<2x32xf32>
    %cst_10 = arith.constant dense<0.000000e+00> : vector<2x32xf32>
    %17 = tpu.matmul %13, %0, %cst_10 {dimension_numbers = #tpu.dot_dimension_numbers<[1], [0], [0], [1], [0, 0, 1, 1], [], []>} : vector<2x32xf32>, vector<32x32xf32>, vector<2x32xf32> -> vector<2x32xf32>
    %18 = arith.addf %16, %17 : vector<2x32xf32>
    %19 = math.tanh %18 : vector<2x32xf32>
    %c3_i32 = arith.constant 3 : i32
    %20 = arith.index_cast %c3_i32 : i32 to index
    %c0_11 = arith.constant 0 : index
    %c0_12 = arith.constant 0 : index
    %21 = vector.load %arg1[%20, %c0_11, %c0_12] : memref<8x2x32xf32, #tpu.memory_space<vmem>>, vector<1x2x32xf32>
    %22 = vector.shape_cast %21 : vector<1x2x32xf32> to vector<2x32xf32>
    %cst_13 = arith.constant dense<0.000000e+00> : vector<2x32xf32>
    %23 = tpu.matmul %19, %0, %cst_13 {dimension_numbers = #tpu.dot_dimension_numbers<[1], [0], [0], [1], [0, 0, 1, 1], [], []>} : vector<2x32xf32>, vector<32x32xf32>, vector<2x32xf32> -> vector<2x32xf32>
    %24 = arith.addf %22, %23 : vector<2x32xf32>
    %25 = math.tanh %24 : vector<2x32xf32>
    %c4_i32 = arith.constant 4 : i32
    %26 = arith.index_cast %c4_i32 : i32 to index
    %c0_14 = arith.constant 0 : index
    %c0_15 = arith.constant 0 : index
    %27 = vector.load %arg1[%26, %c0_14, %c0_15] : memref<8x2x32xf32, #tpu.memory_space<vmem>>, vector<1x2x32xf32>
    %28 = vector.shape_cast %27 : vector<1x2x32xf32> to vector<2x32xf32>
    %cst_16 = arith.constant dense<0.000000e+00> : vector<2x32xf32>
    %29 = tpu.matmul %25, %0, %cst_16 {dimension_numbers = #tpu.dot_dimension_numbers<[1], [0], [0], [1], [0, 0, 1, 1], [], []>} : vector<2x32xf32>, vector<32x32xf32>, vector<2x32xf32> -> vector<2x32xf32>
    %30 = arith.addf %28, %29 : vector<2x32xf32>
    %31 = math.tanh %30 : vector<2x32xf32>
    %c5_i32 = arith.constant 5 : i32
    %32 = arith.index_cast %c5_i32 : i32 to index
    %c0_17 = arith.constant 0 : index
    %c0_18 = arith.constant 0 : index
    %33 = vector.load %arg1[%32, %c0_17, %c0_18] : memref<8x2x32xf32, #tpu.memory_space<vmem>>, vector<1x2x32xf32>
    %34 = vector.shape_cast %33 : vector<1x2x32xf32> to vector<2x32xf32>
    %cst_19 = arith.constant dense<0.000000e+00> : vector<2x32xf32>
    %35 = tpu.matmul %31, %0, %cst_19 {dimension_numbers = #tpu.dot_dimension_numbers<[1], [0], [0], [1], [0, 0, 1, 1], [], []>} : vector<2x32xf32>, vector<32x32xf32>, vector<2x32xf32> -> vector<2x32xf32>
    %36 = arith.addf %34, %35 : vector<2x32xf32>
    %37 = math.tanh %36 : vector<2x32xf32>
    %c6_i32 = arith.constant 6 : i32
    %38 = arith.index_cast %c6_i32 : i32 to index
    %c0_20 = arith.constant 0 : index
    %c0_21 = arith.constant 0 : index
    %39 = vector.load %arg1[%38, %c0_20, %c0_21] : memref<8x2x32xf32, #tpu.memory_space<vmem>>, vector<1x2x32xf32>
    %40 = vector.shape_cast %39 : vector<1x2x32xf32> to vector<2x32xf32>
    %cst_22 = arith.constant dense<0.000000e+00> : vector<2x32xf32>
    %41 = tpu.matmul %37, %0, %cst_22 {dimension_numbers = #tpu.dot_dimension_numbers<[1], [0], [0], [1], [0, 0, 1, 1], [], []>} : vector<2x32xf32>, vector<32x32xf32>, vector<2x32xf32> -> vector<2x32xf32>
    %42 = arith.addf %40, %41 : vector<2x32xf32>
    %43 = math.tanh %42 : vector<2x32xf32>
    %c7_i32 = arith.constant 7 : i32
    %44 = arith.index_cast %c7_i32 : i32 to index
    %c0_23 = arith.constant 0 : index
    %c0_24 = arith.constant 0 : index
    %45 = vector.load %arg1[%44, %c0_23, %c0_24] : memref<8x2x32xf32, #tpu.memory_space<vmem>>, vector<1x2x32xf32>
    %46 = vector.shape_cast %45 : vector<1x2x32xf32> to vector<2x32xf32>
    %cst_25 = arith.constant dense<0.000000e+00> : vector<2x32xf32>
    %47 = tpu.matmul %43, %0, %cst_25 {dimension_numbers = #tpu.dot_dimension_numbers<[1], [0], [0], [1], [0, 0, 1, 1], [], []>} : vector<2x32xf32>, vector<32x32xf32>, vector<2x32xf32> -> vector<2x32xf32>
    %48 = arith.addf %46, %47 : vector<2x32xf32>
    %49 = math.tanh %48 : vector<2x32xf32>
    %c8_i32 = arith.constant 8 : i32
    %c0_26 = arith.constant 0 : index
    %c0_27 = arith.constant 0 : index
    %50 = vector.load %arg7[%c0_26, %c0_27] : memref<2x32xf32, #tpu.memory_space<vmem>>, vector<2x32xf32>
    tpu.vector_store %arg7[%c0_26, %c0_27], %49 {strides = array<i32>} : memref<2x32xf32, #tpu.memory_space<vmem>>, vector<2x32xf32>,
    %c0_28 = arith.constant 0 : index
    %c0_29 = arith.constant 0 : index
    %51 = vector.load %arg4[%c0_28, %c0_29] : memref<32x10xf32, #tpu.memory_space<vmem>>, vector<32x10xf32>
    %cst_30 = arith.constant dense<0.000000e+00> : vector<2x10xf32>
    %52 = tpu.matmul %49, %51, %cst_30 {dimension_numbers = #tpu.dot_dimension_numbers<[1], [0], [0], [1], [0, 0, 1, 1], [], []>} : vector<2x32xf32>, vector<32x10xf32>, vector<2x10xf32> -> vector<2x10xf32>
    %c0_31 = arith.constant 0 : index
    %c0_32 = arith.constant 0 : index
    %53 = vector.load %arg5[%c0_31, %c0_32] : memref<1x10xf32, #tpu.memory_space<vmem>>, vector<1x10xf32>
    %54 = vector.broadcast %53 : vector<1x10xf32> to vector<2x10xf32>
    %55 = arith.addf %52, %54 : vector<2x10xf32>
    %c0_33 = arith.constant 0 : index
    %c0_34 = arith.constant 0 : index
    %56 = vector.load %arg6[%c0_33, %c0_34] : memref<2x10xf32, #tpu.memory_space<vmem>>, vector<2x10xf32>
    tpu.vector_store %arg6[%c0_33, %c0_34], %55 {strides = array<i32>} : memref<2x10xf32, #tpu.memory_space<vmem>>, vector<2x10xf32>,
    return
  }
  func.func @transform_0(%arg0: i32) -> (i32, i32, i32) {
    %c0_i32 = arith.constant 0 : i32
    %c0_i32_0 = arith.constant 0 : i32
    %c0_i32_1 = arith.constant 0 : i32
    %c0_i32_2 = arith.constant 0 : i32
    return %c0_i32, %c0_i32_0, %c0_i32_1 : i32, i32, i32
  }
  func.func @transform_1(%arg0: i32) -> (i32, i32) {
    %c0_i32 = arith.constant 0 : i32
    %c0_i32_0 = arith.constant 0 : i32
    %c0_i32_1 = arith.constant 0 : i32
    return %c0_i32, %c0_i32_0 : i32, i32
  }
  func.func @transform_2(%arg0: i32) -> (i32, i32) {
    %c0_i32 = arith.constant 0 : i32
    %c0_i32_0 = arith.constant 0 : i32
    %c0_i32_1 = arith.constant 0 : i32
    return %c0_i32, %c0_i32_0 : i32, i32
  }
  func.func @transform_3(%arg0: i32) -> (i32, i32) {
    %c0_i32 = arith.constant 0 : i32
    %c0_i32_0 = arith.constant 0 : i32
    %c0_i32_1 = arith.constant 0 : i32
    return %c0_i32, %c0_i32_0 : i32, i32
  }
  func.func @transform_4(%arg0: i32) -> (i32, i32) {
    %c0_i32 = arith.constant 0 : i32
    %c0_i32_0 = arith.constant 0 : i32
    %c0_i32_1 = arith.constant 0 : i32
    return %c0_i32, %c0_i32_0 : i32, i32
  }
  func.func @transform_5(%arg0: i32) -> (i32, i32) {
    %c0_i32 = arith.constant 0 : i32
    %c0_i32_0 = arith.constant 0 : i32
    %c0_i32_1 = arith.constant 0 : i32
    return %c0_i32, %c0_i32_0 : i32, i32
  }
  func.func @transform_6(%arg0: i32) -> (i32, i32) {
    %c0_i32 = arith.constant 0 : i32
    %c0_i32_0 = arith.constant 0 : i32
    %c0_i32_1 = arith.constant 0 : i32
    return %c0_i32, %c0_i32_0 : i32, i32
  }
}

</mosaic_0001>

<llo_original>
// kernel: rnn_forward.1
$region0: #{rnn_forward.1}
  #allocation0 [shape = 'u32[]', space=smem, size = 0x4, offset = 0x4, fixed_abs, tag = 'smem constant byte address 0x4 - core index']
  #allocation1 [shape = 'u32[144,128]{1,0:T(1,128)}', space=vmem, size = 0x12000, scoped, tag = 'internal scratch']
  %s0 = inlined_call_operand.vmem [shape: f32[8,2,32], index: 0, kind: input, shape index: {}]
  %s1 = inlined_call_operand.vmem [shape: f32[2,32], index: 1, kind: input, shape index: {}]
  %s2 = inlined_call_operand.vmem [shape: f32[32,32], index: 2, kind: input, shape index: {}]
  %s3 = inlined_call_operand.vmem [shape: f32[32,10], index: 3, kind: input, shape index: {}]
  %s4 = inlined_call_operand.vmem [shape: f32[1,10], index: 4, kind: input, shape index: {}]
  %s5 = inlined_call_operand.hbm [shape: f32[2,10], index: 5, kind: output, shape index: {0}]
  %s6 = inlined_call_operand.hbm [shape: f32[2,32], index: 6, kind: output, shape index: {1}]
  %7 = xla_tuple %s5, %s6
  %s8 = sld [smem:[#allocation0]]
  $region38: #{rnn_forward.1} parent=0
    _
  %s10 = ssub.s32 1, %s8
  %s11 = scalar_select 0, %s10, %s8
  $region1: #{rnn_forward.1} parent=0
    #allocation2 [shape = 'u8[1024]{0}', space=vmem, size = 0x400, scoped, tag = 'output window, operand 0, single buffered']
    #allocation3 [shape = 's32[1]{0}', space=sflag, size = 0x4, scoped, tag = 'scoped memory for rnn_forward.1']
    #allocation4 [shape = 'u8[1024]{0}', space=vmem, size = 0x400, scoped, tag = 'output window, operand 1, single buffered']
    #allocation5 [shape = 's32[1]{0}', space=sflag, size = 0x4, scoped, tag = 'scoped memory for rnn_forward.1']
    %12 = vsyncpa [#allocation3], 0
    %13 = vsyncpa [#allocation5], 0
    // Predicated region
    $region2: #{rnn_forward.1} parent=1 // pred_check
      _
    $region3: #{rnn_forward.1} parent=1 // pred_check_branch
      %15 = sbr.rel (0) target = $region5
    $region4: #{rnn_forward.1} parent=1 // pred_region
      _
    $region5: #{rnn_forward.1} parent=1 // pred_fallthru
      _
    // Predicated region
    $region6: #{rnn_forward.1} parent=1 // pred_check
      _
    $region7: #{rnn_forward.1} parent=1 // pred_check_branch
      %17 = sbr.rel (0) target = $region9
    $region8: #{rnn_forward.1} parent=1 // pred_region
      _
    $region9: #{rnn_forward.1} parent=1 // pred_fallthru
      _
    // Predicated region
    $region10: #{rnn_forward.1} parent=1 // pred_check
      _
    $region11: #{rnn_forward.1} parent=1 // pred_check_branch
      %19 = sbr.rel (0) target = $region13
    $region12: #{rnn_forward.1} parent=1 // pred_region
      _
    $region13: #{rnn_forward.1} parent=1 // pred_fallthru
      _
    // Predicated region
    $region14: #{rnn_forward.1} parent=1 // pred_check
      _
    $region15: #{rnn_forward.1} parent=1 // pred_check_branch
      %21 = sbr.rel (0) target = $region17
    $region16: #{rnn_forward.1} parent=1 // pred_region
      _
    $region17: #{rnn_forward.1} parent=1 // pred_fallthru
      _
    // Predicated region
    $region18: #{rnn_forward.1} parent=1 // pred_check
      _
    $region19: #{rnn_forward.1} parent=1 // pred_check_branch
      %23 = sbr.rel (0) target = $region21
    $region20: #{rnn_forward.1} parent=1 // pred_region
      _
    $region21: #{rnn_forward.1} parent=1 // pred_fallthru
      _
    %v24 = vld [vmem:[%s2] sm:$0xff]
    %v25 = vld [vmem:[%s2 + $0x8] sm:$0xff]
    %v26 = vld [vmem:[%s2 + $0x10] sm:$0xff]
    %v27 = vld [vmem:[%s2 + $0x18] sm:$0xff]
    %v28 = vld [vmem:[%s1] sm:$0x3]
    %v29 = vld [vmem:[%s0] sm:$0x3]
    %vm30 = vcmask 261120
    %v32 = vsel %vm30, %v28, 0
    %34 = vmatprep.subr.mxu0 0.0
    %35 = vmatpush1.msra.mxu0 0.0
    %36 = vmatprep.subr.mxu0 0.0
    %37 = vmatpush1.msra.mxu0 0.0
    %38 = vmatprep.subr.mxu0 0.0
    %39 = vmatpush1.msra.mxu0 0.0
    %40 = vmatprep.subr.mxu0 0.0
    %41 = vmatpush1.msra.mxu0 0.0
    %42 = vmatprep.subr.mxu0 0.0
    %43 = vmatpush1.msra.mxu0 0.0
    %44 = vmatprep.subr.mxu0 0.0
    %45 = vmatpush1.msra.mxu0 0.0
    %46 = vmatprep.subr.mxu0 0.0
    %47 = vmatpush1.msra.mxu0 0.0
    %48 = vmatprep.subr.mxu0 0.0
    %49 = vmatpush1.msra.mxu0 0.0
    %50 = vmatprep.subr.mxu0 0.0
    %51 = vmatpush1.msra.mxu0 0.0
    %52 = vmatprep.subr.mxu0 0.0
    %53 = vmatpush1.msra.mxu0 0.0
    %54 = vmatprep.subr.mxu0 0.0
    %55 = vmatpush1.msra.mxu0 0.0
    %56 = vmatprep.subr.mxu0 0.0
    %57 = vmatpush1.msra.mxu0 0.0
    %58 = vmatprep.subr.mxu0 0.0
    %59 = vmatpush1.msra.mxu0 %v27
    %60 = vmatprep.subr.mxu0 0.0
    %61 = vmatpush1.msra.mxu0 %v26
    %62 = vmatprep.subr.mxu0 0.0
    %63 = vmatpush1.msra.mxu0 %v25
    %64 = vmatprep.subr.mxu0 0.0
    %65 = vmatpush1.msra.mxu0 %v24
    %66 = vmatprep.subr.mxu0 0.0
    %67 = vmatpush2.msra.mxu0 0.0
    %68 = vmatprep.subr.mxu0 0.0
    %69 = vmatpush2.msra.mxu0 0.0
    %70 = vmatprep.subr.mxu0 0.0
    %71 = vmatpush2.msra.mxu0 0.0
    %72 = vmatprep.subr.mxu0 0.0
    %73 = vmatpush2.msra.mxu0 0.0
    %74 = vmatprep.subr.mxu0 0.0
    %75 = vmatpush2.msra.mxu0 0.0
    %76 = vmatprep.subr.mxu0 0.0
    %77 = vmatpush2.msra.mxu0 0.0
    %78 = vmatprep.subr.mxu0 0.0
    %79 = vmatpush2.msra.mxu0 0.0
    %80 = vmatprep.subr.mxu0 0.0
    %81 = vmatpush2.msra.mxu0 0.0
    %82 = vmatprep.subr.mxu0 0.0
    %83 = vmatpush2.msra.mxu0 0.0
    %84 = vmatprep.subr.mxu0 0.0
    %85 = vmatpush2.msra.mxu0 0.0
    %86 = vmatprep.subr.mxu0 0.0
    %87 = vmatpush2.msra.mxu0 0.0
    %88 = vmatprep.subr.mxu0 0.0
    %89 = vmatpush2.msra.mxu0 0.0
    %90 = vmatprep.subr.mxu0 0.0
    %91 = vmatpush2.msra.mxu0 0.0
    %92 = vmatprep.subr.mxu0 0.0
    %93 = vmatpush2.msra.mxu0 0.0
    %94 = vmatprep.subr.mxu0 0.0
    %95 = vmatpush2.msra.mxu0 0.0
    %96 = vmatprep.subr.mxu0 0.0
    %97 = vmatpush2.msra.mxu0 0.0
    %98 = vmatprep.mubr.f32.mxu0 0.0
    %99 = vmatmul.mubr.f32.gmra.mxu0 %v32
    %v100 = vpop.f32.mrf.mxu0
    %v101 = vadd.f32 0.0, %v100
    %v102 = vpop.f32.mrf.mxu0
    %103 = vdwg.mxu0
    %v104 = vadd.f32 %v29, %v101
    %v105 = vtanh.pop %v104
    %s106 = scalar_lea.vmem %s0, 2
    %v107 = vld [vmem:[%s106] sm:$0x3]
    %v109 = vsel %vm30, %v105, 0
    %111 = vmatprep.subr.mxu0 0.0
    %112 = vmatpush1.msra.mxu0 0.0
    %113 = vmatprep.subr.mxu0 0.0
    %114 = vmatpush1.msra.mxu0 0.0
    %115 = vmatprep.subr.mxu0 0.0
    %116 = vmatpush1.msra.mxu0 0.0
    %117 = vmatprep.subr.mxu0 0.0
    %118 = vmatpush1.msra.mxu0 0.0
    %119 = vmatprep.subr.mxu0 0.0
    %120 = vmatpush1.msra.mxu0 0.0
    %121 = vmatprep.subr.mxu0 0.0
    %122 = vmatpush1.msra.mxu0 0.0
    %123 = vmatprep.subr.mxu0 0.0
    %124 = vmatpush1.msra.mxu0 0.0
    %125 = vmatprep.subr.mxu0 0.0
    %126 = vmatpush1.msra.mxu0 0.0
    %127 = vmatprep.subr.mxu0 0.0
    %128 = vmatpush1.msra.mxu0 0.0
    %129 = vmatprep.subr.mxu0 0.0
    %130 = vmatpush1.msra.mxu0 0.0
    %131 = vmatprep.subr.mxu0 0.0
    %132 = vmatpush1.msra.mxu0 0.0
    %133 = vmatprep.subr.mxu0 0.0
    %134 = vmatpush1.msra.mxu0 0.0
    %135 = vmatprep.subr.mxu0 0.0
    %136 = vmatpush1.msra.mxu0 %v27
    %137 = vmatprep.subr.mxu0 0.0
    %138 = vmatpush1.msra.mxu0 %v26
    %139 = vmatprep.subr.mxu0 0.0
    %140 = vmatpush1.msra.mxu0 %v25
    %141 = vmatprep.subr.mxu0 0.0
    %142 = vmatpush1.msra.mxu0 %v24
    %143 = vmatprep.subr.mxu0 0.0
    %144 = vmatpush2.msra.mxu0 0.0
    %145 = vmatprep.subr.mxu0 0.0
    %146 = vmatpush2.msra.mxu0 0.0
    %147 = vmatprep.subr.mxu0 0.0
    %148 = vmatpush2.msra.mxu0 0.0
    %149 = vmatprep.subr.mxu0 0.0
    %150 = vmatpush2.msra.mxu0 0.0
    %151 = vmatprep.subr.mxu0 0.0
    %152 = vmatpush2.msra.mxu0 0.0
    %153 = vmatprep.subr.mxu0 0.0
    %154 = vmatpush2.msra.mxu0 0.0
    %155 = vmatprep.subr.mxu0 0.0
    %156 = vmatpush2.msra.mxu0 0.0
    %157 = vmatprep.subr.mxu0 0.0
    %158 = vmatpush2.msra.mxu0 0.0
    %159 = vmatprep.subr.mxu0 0.0
    %160 = vmatpush2.msra.mxu0 0.0
    %161 = vmatprep.subr.mxu0 0.0
    %162 = vmatpush2.msra.mxu0 0.0
    %163 = vmatprep.subr.mxu0 0.0
    %164 = vmatpush2.msra.mxu0 0.0
    %165 = vmatprep.subr.mxu0 0.0
    %166 = vmatpush2.msra.mxu0 0.0
    %167 = vmatprep.subr.mxu0 0.0
    %168 = vmatpush2.msra.mxu0 0.0
    %169 = vmatprep.subr.mxu0 0.0
    %170 = vmatpush2.msra.mxu0 0.0
    %171 = vmatprep.subr.mxu0 0.0
    %172 = vmatpush2.msra.mxu0 0.0
    %173 = vmatprep.subr.mxu0 0.0
    %174 = vmatpush2.msra.mxu0 0.0
    %175 = vmatprep.mubr.f32.mxu0 0.0
    %176 = vmatmul.mubr.f32.gmra.mxu0 %v109
    %v177 = vpop.f32.mrf.mxu0
    %v178 = vadd.f32 0.0, %v177
    %v179 = vpop.f32.mrf.mxu0
    %180 = vdwg.mxu0
    %v181 = vadd.f32 %v107, %v178
    %v182 = vtanh.pop %v181
    %s183 = scalar_lea.vmem %s0, 4
    %v184 = vld [vmem:[%s183] sm:$0x3]
    %v186 = vsel %vm30, %v182, 0
    %188 = vmatprep.subr.mxu0 0.0
    %189 = vmatpush1.msra.mxu0 0.0
    %190 = vmatprep.subr.mxu0 0.0
    %191 = vmatpush1.msra.mxu0 0.0
    %192 = vmatprep.subr.mxu0 0.0
    %193 = vmatpush1.msra.mxu0 0.0
    %194 = vmatprep.subr.mxu0 0.0
    %195 = vmatpush1.msra.mxu0 0.0
    %196 = vmatprep.subr.mxu0 0.0
    %197 = vmatpush1.msra.mxu0 0.0
    %198 = vmatprep.subr.mxu0 0.0
    %199 = vmatpush1.msra.mxu0 0.0
    %200 = vmatprep.subr.mxu0 0.0
    %201 = vmatpush1.msra.mxu0 0.0
    %202 = vmatprep.subr.mxu0 0.0
    %203 = vmatpush1.msra.mxu0 0.0
    %204 = vmatprep.subr.mxu0 0.0
    %205 = vmatpush1.msra.mxu0 0.0
    %206 = vmatprep.subr.mxu0 0.0
    %207 = vmatpush1.msra.mxu0 0.0
    %208 = vmatprep.subr.mxu0 0.0
    %209 = vmatpush1.msra.mxu0 0.0
    %210 = vmatprep.subr.mxu0 0.0
    %211 = vmatpush1.msra.mxu0 0.0
    %212 = vmatprep.subr.mxu0 0.0
    %213 = vmatpush1.msra.mxu0 %v27
    %214 = vmatprep.subr.mxu0 0.0
    %215 = vmatpush1.msra.mxu0 %v26
    %216 = vmatprep.subr.mxu0 0.0
    %217 = vmatpush1.msra.mxu0 %v25
    %218 = vmatprep.subr.mxu0 0.0
    %219 = vmatpush1.msra.mxu0 %v24
    %220 = vmatprep.subr.mxu0 0.0
    %221 = vmatpush2.msra.mxu0 0.0
    %222 = vmatprep.subr.mxu0 0.0
    %223 = vmatpush2.msra.mxu0 0.0
    %224 = vmatprep.subr.mxu0 0.0
    %225 = vmatpush2.msra.mxu0 0.0
    %226 = vmatprep.subr.mxu0 0.0
    %227 = vmatpush2.msra.mxu0 0.0
    %228 = vmatprep.subr.mxu0 0.0
    %229 = vmatpush2.msra.mxu0 0.0
    %230 = vmatprep.subr.mxu0 0.0
    %231 = vmatpush2.msra.mxu0 0.0
    %232 = vmatprep.subr.mxu0 0.0
    %233 = vmatpush2.msra.mxu0 0.0
    %234 = vmatprep.subr.mxu0 0.0
    %235 = vmatpush2.msra.mxu0 0.0
    %236 = vmatprep.subr.mxu0 0.0
    %237 = vmatpush2.msra.mxu0 0.0
    %238 = vmatprep.subr.mxu0 0.0
    %239 = vmatpush2.msra.mxu0 0.0
    %240 = vmatprep.subr.mxu0 0.0
    %241 = vmatpush2.msra.mxu0 0.0
    %242 = vmatprep.subr.mxu0 0.0
    %243 = vmatpush2.msra.mxu0 0.0
    %244 = vmatprep.subr.mxu0 0.0
    %245 = vmatpush2.msra.mxu0 0.0
    %246 = vmatprep.subr.mxu0 0.0
    %247 = vmatpush2.msra.mxu0 0.0
    %248 = vmatprep.subr.mxu0 0.0
    %249 = vmatpush2.msra.mxu0 0.0
    %250 = vmatprep.subr.mxu0 0.0
    %251 = vmatpush2.msra.mxu0 0.0
    %252 = vmatprep.mubr.f32.mxu0 0.0
    %253 = vmatmul.mubr.f32.gmra.mxu0 %v186
    %v254 = vpop.f32.mrf.mxu0
    %v255 = vadd.f32 0.0, %v254
    %v256 = vpop.f32.mrf.mxu0
    %257 = vdwg.mxu0
    %v258 = vadd.f32 %v184, %v255
    %v259 = vtanh.pop %v258
    %s260 = scalar_lea.vmem %s0, 6
    %v261 = vld [vmem:[%s260] sm:$0x3]
    %v263 = vsel %vm30, %v259, 0
    %265 = vmatprep.subr.mxu0 0.0
    %266 = vmatpush1.msra.mxu0 0.0
    %267 = vmatprep.subr.mxu0 0.0
    %268 = vmatpush1.msra.mxu0 0.0
    %269 = vmatprep.subr.mxu0 0.0
    %270 = vmatpush1.msra.mxu0 0.0
    %271 = vmatprep.subr.mxu0 0.0
    %272 = vmatpush1.msra.mxu0 0.0
    %273 = vmatprep.subr.mxu0 0.0
    %274 = vmatpush1.msra.mxu0 0.0
    %275 = vmatprep.subr.mxu0 0.0
    %276 = vmatpush1.msra.mxu0 0.0
    %277 = vmatprep.subr.mxu0 0.0
    %278 = vmatpush1.msra.mxu0 0.0
    %279 = vmatprep.subr.mxu0 0.0
    %280 = vmatpush1.msra.mxu0 0.0
    %281 = vmatprep.subr.mxu0 0.0
    %282 = vmatpush1.msra.mxu0 0.0
    %283 = vmatprep.subr.mxu0 0.0
    %284 = vmatpush1.msra.mxu0 0.0
    %285 = vmatprep.subr.mxu0 0.0
    %286 = vmatpush1.msra.mxu0 0.0
    %287 = vmatprep.subr.mxu0 0.0
    %288 = vmatpush1.msra.mxu0 0.0
    %289 = vmatprep.subr.mxu0 0.0
    %290 = vmatpush1.msra.mxu0 %v27
    %291 = vmatprep.subr.mxu0 0.0
    %292 = vmatpush1.msra.mxu0 %v26
    %293 = vmatprep.subr.mxu0 0.0
    %294 = vmatpush1.msra.mxu0 %v25
    %295 = vmatprep.subr.mxu0 0.0
    %296 = vmatpush1.msra.mxu0 %v24
    %297 = vmatprep.subr.mxu0 0.0
    %298 = vmatpush2.msra.mxu0 0.0
    %299 = vmatprep.subr.mxu0 0.0
    %300 = vmatpush2.msra.mxu0 0.0
    %301 = vmatprep.subr.mxu0 0.0
    %302 = vmatpush2.msra.mxu0 0.0
    %303 = vmatprep.subr.mxu0 0.0
    %304 = vmatpush2.msra.mxu0 0.0
    %305 = vmatprep.subr.mxu0 0.0
    %306 = vmatpush2.msra.mxu0 0.0
    %307 = vmatprep.subr.mxu0 0.0
    %308 = vmatpush2.msra.mxu0 0.0
    %309 = vmatprep.subr.mxu0 0.0
    %310 = vmatpush2.msra.mxu0 0.0
    %311 = vmatprep.subr.mxu0 0.0
    %312 = vmatpush2.msra.mxu0 0.0
    %313 = vmatprep.subr.mxu0 0.0
    %314 = vmatpush2.msra.mxu0 0.0
    %315 = vmatprep.subr.mxu0 0.0
    %316 = vmatpush2.msra.mxu0 0.0
    %317 = vmatprep.subr.mxu0 0.0
    %318 = vmatpush2.msra.mxu0 0.0
    %319 = vmatprep.subr.mxu0 0.0
    %320 = vmatpush2.msra.mxu0 0.0
    %321 = vmatprep.subr.mxu0 0.0
    %322 = vmatpush2.msra.mxu0 0.0
    %323 = vmatprep.subr.mxu0 0.0
    %324 = vmatpush2.msra.mxu0 0.0
    %325 = vmatprep.subr.mxu0 0.0
    %326 = vmatpush2.msra.mxu0 0.0
    %327 = vmatprep.subr.mxu0 0.0
    %328 = vmatpush2.msra.mxu0 0.0
    %329 = vmatprep.mubr.f32.mxu0 0.0
    %330 = vmatmul.mubr.f32.gmra.mxu0 %v263
    %v331 = vpop.f32.mrf.mxu0
    %v332 = vadd.f32 0.0, %v331
    %v333 = vpop.f32.mrf.mxu0
    %334 = vdwg.mxu0
    %v335 = vadd.f32 %v261, %v332
    %v336 = vtanh.pop %v335
    %s337 = scalar_lea.vmem %s0, 8
    %v338 = vld [vmem:[%s337] sm:$0x3]
    %v340 = vsel %vm30, %v336, 0
    %342 = vmatprep.subr.mxu0 0.0
    %343 = vmatpush1.msra.mxu0 0.0
    %344 = vmatprep.subr.mxu0 0.0
    %345 = vmatpush1.msra.mxu0 0.0
    %346 = vmatprep.subr.mxu0 0.0
    %347 = vmatpush1.msra.mxu0 0.0
    %348 = vmatprep.subr.mxu0 0.0
    %349 = vmatpush1.msra.mxu0 0.0
    %350 = vmatprep.subr.mxu0 0.0
    %351 = vmatpush1.msra.mxu0 0.0
    %352 = vmatprep.subr.mxu0 0.0
    %353 = vmatpush1.msra.mxu0 0.0
    %354 = vmatprep.subr.mxu0 0.0
    %355 = vmatpush1.msra.mxu0 0.0
    %356 = vmatprep.subr.mxu0 0.0
    %357 = vmatpush1.msra.mxu0 0.0
    %358 = vmatprep.subr.mxu0 0.0
    %359 = vmatpush1.msra.mxu0 0.0
    %360 = vmatprep.subr.mxu0 0.0
    %361 = vmatpush1.msra.mxu0 0.0
    %362 = vmatprep.subr.mxu0 0.0
    %363 = vmatpush1.msra.mxu0 0.0
    %364 = vmatprep.subr.mxu0 0.0
    %365 = vmatpush1.msra.mxu0 0.0
    %366 = vmatprep.subr.mxu0 0.0
    %367 = vmatpush1.msra.mxu0 %v27
    %368 = vmatprep.subr.mxu0 0.0
    %369 = vmatpush1.msra.mxu0 %v26
    %370 = vmatprep.subr.mxu0 0.0
    %371 = vmatpush1.msra.mxu0 %v25
    %372 = vmatprep.subr.mxu0 0.0
    %373 = vmatpush1.msra.mxu0 %v24
    %374 = vmatprep.subr.mxu0 0.0
    %375 = vmatpush2.msra.mxu0 0.0
    %376 = vmatprep.subr.mxu0 0.0
    %377 = vmatpush2.msra.mxu0 0.0
    %378 = vmatprep.subr.mxu0 0.0
    %379 = vmatpush2.msra.mxu0 0.0
    %380 = vmatprep.subr.mxu0 0.0
    %381 = vmatpush2.msra.mxu0 0.0
    %382 = vmatprep.subr.mxu0 0.0
    %383 = vmatpush2.msra.mxu0 0.0
    %384 = vmatprep.subr.mxu0 0.0
    %385 = vmatpush2.msra.mxu0 0.0
    %386 = vmatprep.subr.mxu0 0.0
    %387 = vmatpush2.msra.mxu0 0.0
    %388 = vmatprep.subr.mxu0 0.0
    %389 = vmatpush2.msra.mxu0 0.0
    %390 = vmatprep.subr.mxu0 0.0
    %391 = vmatpush2.msra.mxu0 0.0
    %392 = vmatprep.subr.mxu0 0.0
    %393 = vmatpush2.msra.mxu0 0.0
    %394 = vmatprep.subr.mxu0 0.0
    %395 = vmatpush2.msra.mxu0 0.0
    %396 = vmatprep.subr.mxu0 0.0
    %397 = vmatpush2.msra.mxu0 0.0
    %398 = vmatprep.subr.mxu0 0.0
    %399 = vmatpush2.msra.mxu0 0.0
    %400 = vmatprep.subr.mxu0 0.0
    %401 = vmatpush2.msra.mxu0 0.0
    %402 = vmatprep.subr.mxu0 0.0
    %403 = vmatpush2.msra.mxu0 0.0
    %404 = vmatprep.subr.mxu0 0.0
    %405 = vmatpush2.msra.mxu0 0.0
    %406 = vmatprep.mubr.f32.mxu0 0.0
    %407 = vmatmul.mubr.f32.gmra.mxu0 %v340
    %v408 = vpop.f32.mrf.mxu0
    %v409 = vadd.f32 0.0, %v408
    %v410 = vpop.f32.mrf.mxu0
    %411 = vdwg.mxu0
    %v412 = vadd.f32 %v338, %v409
    %v413 = vtanh.pop %v412
    %s414 = scalar_lea.vmem %s0, 10
    %v415 = vld [vmem:[%s414] sm:$0x3]
    %v417 = vsel %vm30, %v413, 0
    %419 = vmatprep.subr.mxu0 0.0
    %420 = vmatpush1.msra.mxu0 0.0
    %421 = vmatprep.subr.mxu0 0.0
    %422 = vmatpush1.msra.mxu0 0.0
    %423 = vmatprep.subr.mxu0 0.0
    %424 = vmatpush1.msra.mxu0 0.0
    %425 = vmatprep.subr.mxu0 0.0
    %426 = vmatpush1.msra.mxu0 0.0
    %427 = vmatprep.subr.mxu0 0.0
    %428 = vmatpush1.msra.mxu0 0.0
    %429 = vmatprep.subr.mxu0 0.0
    %430 = vmatpush1.msra.mxu0 0.0
    %431 = vmatprep.subr.mxu0 0.0
    %432 = vmatpush1.msra.mxu0 0.0
    %433 = vmatprep.subr.mxu0 0.0
    %434 = vmatpush1.msra.mxu0 0.0
    %435 = vmatprep.subr.mxu0 0.0
    %436 = vmatpush1.msra.mxu0 0.0
    %437 = vmatprep.subr.mxu0 0.0
    %438 = vmatpush1.msra.mxu0 0.0
    %439 = vmatprep.subr.mxu0 0.0
    %440 = vmatpush1.msra.mxu0 0.0
    %441 = vmatprep.subr.mxu0 0.0
    %442 = vmatpush1.msra.mxu0 0.0
    %443 = vmatprep.subr.mxu0 0.0
    %444 = vmatpush1.msra.mxu0 %v27
    %445 = vmatprep.subr.mxu0 0.0
    %446 = vmatpush1.msra.mxu0 %v26
    %447 = vmatprep.subr.mxu0 0.0
    %448 = vmatpush1.msra.mxu0 %v25
    %449 = vmatprep.subr.mxu0 0.0
    %450 = vmatpush1.msra.mxu0 %v24
    %451 = vmatprep.subr.mxu0 0.0
    %452 = vmatpush2.msra.mxu0 0.0
    %453 = vmatprep.subr.mxu0 0.0
    %454 = vmatpush2.msra.mxu0 0.0
    %455 = vmatprep.subr.mxu0 0.0
    %456 = vmatpush2.msra.mxu0 0.0
    %457 = vmatprep.subr.mxu0 0.0
    %458 = vmatpush2.msra.mxu0 0.0
    %459 = vmatprep.subr.mxu0 0.0
    %460 = vmatpush2.msra.mxu0 0.0
    %461 = vmatprep.subr.mxu0 0.0
    %462 = vmatpush2.msra.mxu0 0.0
    %463 = vmatprep.subr.mxu0 0.0
    %464 = vmatpush2.msra.mxu0 0.0
    %465 = vmatprep.subr.mxu0 0.0
    %466 = vmatpush2.msra.mxu0 0.0
    %467 = vmatprep.subr.mxu0 0.0
    %468 = vmatpush2.msra.mxu0 0.0
    %469 = vmatprep.subr.mxu0 0.0
    %470 = vmatpush2.msra.mxu0 0.0
    %471 = vmatprep.subr.mxu0 0.0
    %472 = vmatpush2.msra.mxu0 0.0
    %473 = vmatprep.subr.mxu0 0.0
    %474 = vmatpush2.msra.mxu0 0.0
    %475 = vmatprep.subr.mxu0 0.0
    %476 = vmatpush2.msra.mxu0 0.0
    %477 = vmatprep.subr.mxu0 0.0
    %478 = vmatpush2.msra.mxu0 0.0
    %479 = vmatprep.subr.mxu0 0.0
    %480 = vmatpush2.msra.mxu0 0.0
    %481 = vmatprep.subr.mxu0 0.0
    %482 = vmatpush2.msra.mxu0 0.0
    %483 = vmatprep.mubr.f32.mxu0 0.0
    %484 = vmatmul.mubr.f32.gmra.mxu0 %v417
    %v485 = vpop.f32.mrf.mxu0
    %v486 = vadd.f32 0.0, %v485
    %v487 = vpop.f32.mrf.mxu0
    %488 = vdwg.mxu0
    %v489 = vadd.f32 %v415, %v486
    %v490 = vtanh.pop %v489
    %s491 = scalar_lea.vmem %s0, 12
    %v492 = vld [vmem:[%s491] sm:$0x3]
    %v494 = vsel %vm30, %v490, 0
    %496 = vmatprep.subr.mxu0 0.0
    %497 = vmatpush1.msra.mxu0 0.0
    %498 = vmatprep.subr.mxu0 0.0
    %499 = vmatpush1.msra.mxu0 0.0
    %500 = vmatprep.subr.mxu0 0.0
    %501 = vmatpush1.msra.mxu0 0.0
    %502 = vmatprep.subr.mxu0 0.0
    %503 = vmatpush1.msra.mxu0 0.0
    %504 = vmatprep.subr.mxu0 0.0
    %505 = vmatpush1.msra.mxu0 0.0
    %506 = vmatprep.subr.mxu0 0.0
    %507 = vmatpush1.msra.mxu0 0.0
    %508 = vmatprep.subr.mxu0 0.0
    %509 = vmatpush1.msra.mxu0 0.0
    %510 = vmatprep.subr.mxu0 0.0
    %511 = vmatpush1.msra.mxu0 0.0
    %512 = vmatprep.subr.mxu0 0.0
    %513 = vmatpush1.msra.mxu0 0.0
    %514 = vmatprep.subr.mxu0 0.0
    %515 = vmatpush1.msra.mxu0 0.0
    %516 = vmatprep.subr.mxu0 0.0
    %517 = vmatpush1.msra.mxu0 0.0
    %518 = vmatprep.subr.mxu0 0.0
    %519 = vmatpush1.msra.mxu0 0.0
    %520 = vmatprep.subr.mxu0 0.0
    %521 = vmatpush1.msra.mxu0 %v27
    %522 = vmatprep.subr.mxu0 0.0
    %523 = vmatpush1.msra.mxu0 %v26
    %524 = vmatprep.subr.mxu0 0.0
    %525 = vmatpush1.msra.mxu0 %v25
    %526 = vmatprep.subr.mxu0 0.0
    %527 = vmatpush1.msra.mxu0 %v24
    %528 = vmatprep.subr.mxu0 0.0
    %529 = vmatpush2.msra.mxu0 0.0
    %530 = vmatprep.subr.mxu0 0.0
    %531 = vmatpush2.msra.mxu0 0.0
    %532 = vmatprep.subr.mxu0 0.0
    %533 = vmatpush2.msra.mxu0 0.0
    %534 = vmatprep.subr.mxu0 0.0
    %535 = vmatpush2.msra.mxu0 0.0
    %536 = vmatprep.subr.mxu0 0.0
    %537 = vmatpush2.msra.mxu0 0.0
    %538 = vmatprep.subr.mxu0 0.0
    %539 = vmatpush2.msra.mxu0 0.0
    %540 = vmatprep.subr.mxu0 0.0
    %541 = vmatpush2.msra.mxu0 0.0
    %542 = vmatprep.subr.mxu0 0.0
    %543 = vmatpush2.msra.mxu0 0.0
    %544 = vmatprep.subr.mxu0 0.0
    %545 = vmatpush2.msra.mxu0 0.0
    %546 = vmatprep.subr.mxu0 0.0
    %547 = vmatpush2.msra.mxu0 0.0
    %548 = vmatprep.subr.mxu0 0.0
    %549 = vmatpush2.msra.mxu0 0.0
    %550 = vmatprep.subr.mxu0 0.0
    %551 = vmatpush2.msra.mxu0 0.0
    %552 = vmatprep.subr.mxu0 0.0
    %553 = vmatpush2.msra.mxu0 0.0
    %554 = vmatprep.subr.mxu0 0.0
    %555 = vmatpush2.msra.mxu0 0.0
    %556 = vmatprep.subr.mxu0 0.0
    %557 = vmatpush2.msra.mxu0 0.0
    %558 = vmatprep.subr.mxu0 0.0
    %559 = vmatpush2.msra.mxu0 0.0
    %560 = vmatprep.mubr.f32.mxu0 0.0
    %561 = vmatmul.mubr.f32.gmra.mxu0 %v494
    %v562 = vpop.f32.mrf.mxu0
    %v563 = vadd.f32 0.0, %v562
    %v564 = vpop.f32.mrf.mxu0
    %565 = vdwg.mxu0
    %v566 = vadd.f32 %v492, %v563
    %v567 = vtanh.pop %v566
    %s568 = scalar_lea.vmem %s0, 14
    %v569 = vld [vmem:[%s568] sm:$0x3]
    %v571 = vsel %vm30, %v567, 0
    %573 = vmatprep.subr.mxu0 0.0
    %574 = vmatpush1.msra.mxu0 0.0
    %575 = vmatprep.subr.mxu0 0.0
    %576 = vmatpush1.msra.mxu0 0.0
    %577 = vmatprep.subr.mxu0 0.0
    %578 = vmatpush1.msra.mxu0 0.0
    %579 = vmatprep.subr.mxu0 0.0
    %580 = vmatpush1.msra.mxu0 0.0
    %581 = vmatprep.subr.mxu0 0.0
    %582 = vmatpush1.msra.mxu0 0.0
    %583 = vmatprep.subr.mxu0 0.0
    %584 = vmatpush1.msra.mxu0 0.0
    %585 = vmatprep.subr.mxu0 0.0
    %586 = vmatpush1.msra.mxu0 0.0
    %587 = vmatprep.subr.mxu0 0.0
    %588 = vmatpush1.msra.mxu0 0.0
    %589 = vmatprep.subr.mxu0 0.0
    %590 = vmatpush1.msra.mxu0 0.0
    %591 = vmatprep.subr.mxu0 0.0
    %592 = vmatpush1.msra.mxu0 0.0
    %593 = vmatprep.subr.mxu0 0.0
    %594 = vmatpush1.msra.mxu0 0.0
    %595 = vmatprep.subr.mxu0 0.0
    %596 = vmatpush1.msra.mxu0 0.0
    %597 = vmatprep.subr.mxu0 0.0
    %598 = vmatpush1.msra.mxu0 %v27
    %599 = vmatprep.subr.mxu0 0.0
    %600 = vmatpush1.msra.mxu0 %v26
    %601 = vmatprep.subr.mxu0 0.0
    %602 = vmatpush1.msra.mxu0 %v25
    %603 = vmatprep.subr.mxu0 0.0
    %604 = vmatpush1.msra.mxu0 %v24
    %605 = vmatprep.subr.mxu0 0.0
    %606 = vmatpush2.msra.mxu0 0.0
    %607 = vmatprep.subr.mxu0 0.0
    %608 = vmatpush2.msra.mxu0 0.0
    %609 = vmatprep.subr.mxu0 0.0
    %610 = vmatpush2.msra.mxu0 0.0
    %611 = vmatprep.subr.mxu0 0.0
    %612 = vmatpush2.msra.mxu0 0.0
    %613 = vmatprep.subr.mxu0 0.0
    %614 = vmatpush2.msra.mxu0 0.0
    %615 = vmatprep.subr.mxu0 0.0
    %616 = vmatpush2.msra.mxu0 0.0
    %617 = vmatprep.subr.mxu0 0.0
    %618 = vmatpush2.msra.mxu0 0.0
    %619 = vmatprep.subr.mxu0 0.0
    %620 = vmatpush2.msra.mxu0 0.0
    %621 = vmatprep.subr.mxu0 0.0
    %622 = vmatpush2.msra.mxu0 0.0
    %623 = vmatprep.subr.mxu0 0.0
    %624 = vmatpush2.msra.mxu0 0.0
    %625 = vmatprep.subr.mxu0 0.0
    %626 = vmatpush2.msra.mxu0 0.0
    %627 = vmatprep.subr.mxu0 0.0
    %628 = vmatpush2.msra.mxu0 0.0
    %629 = vmatprep.subr.mxu0 0.0
    %630 = vmatpush2.msra.mxu0 0.0
    %631 = vmatprep.subr.mxu0 0.0
    %632 = vmatpush2.msra.mxu0 0.0
    %633 = vmatprep.subr.mxu0 0.0
    %634 = vmatpush2.msra.mxu0 0.0
    %635 = vmatprep.subr.mxu0 0.0
    %636 = vmatpush2.msra.mxu0 0.0
    %637 = vmatprep.mubr.f32.mxu0 0.0
    %638 = vmatmul.mubr.f32.gmra.mxu0 %v571
    %v639 = vpop.f32.mrf.mxu0
    %v640 = vadd.f32 0.0, %v639
    %v641 = vpop.f32.mrf.mxu0
    %642 = vdwg.mxu0
    %v643 = vadd.f32 %v569, %v640
    %v644 = vtanh.pop %v643
    %vm645 = vcmask 254976
    %646 = vst.msk [vmem:[#allocation4] sm:$0x3] %vm645, %v644
    %v647 = vld [vmem:[%s3] sm:$0xff]
    %v648 = vld [vmem:[%s3 + $0x8] sm:$0xff]
    %v649 = vld [vmem:[%s3 + $0x10] sm:$0xff]
    %v650 = vld [vmem:[%s3 + $0x18] sm:$0xff]
    %v651 = vld [vmem:[%s4] sm:$0x1]
    %v653 = vlaneseq
    %v654 = vshrl.u32 %v653, 7
    %v655 = vsub.s32 0, %v654
    %v656 = vrot.slane %v651, %v655
    %v659 = vsel %vm30, %v644, 0
    %661 = vmatprep.subr.mxu0 0.0
    %662 = vmatpush1.msra.mxu0 0.0
    %663 = vmatprep.subr.mxu0 0.0
    %664 = vmatpush1.msra.mxu0 0.0
    %665 = vmatprep.subr.mxu0 0.0
    %666 = vmatpush1.msra.mxu0 0.0
    %667 = vmatprep.subr.mxu0 0.0
    %668 = vmatpush1.msra.mxu0 0.0
    %669 = vmatprep.subr.mxu0 0.0
    %670 = vmatpush1.msra.mxu0 0.0
    %671 = vmatprep.subr.mxu0 0.0
    %672 = vmatpush1.msra.mxu0 0.0
    %673 = vmatprep.subr.mxu0 0.0
    %674 = vmatpush1.msra.mxu0 0.0
    %675 = vmatprep.subr.mxu0 0.0
    %676 = vmatpush1.msra.mxu0 0.0
    %677 = vmatprep.subr.mxu0 0.0
    %678 = vmatpush1.msra.mxu0 0.0
    %679 = vmatprep.subr.mxu0 0.0
    %680 = vmatpush1.msra.mxu0 0.0
    %681 = vmatprep.subr.mxu0 0.0
    %682 = vmatpush1.msra.mxu0 0.0
    %683 = vmatprep.subr.mxu0 0.0
    %684 = vmatpush1.msra.mxu0 0.0
    %685 = vmatprep.subr.mxu0 0.0
    %686 = vmatpush1.msra.mxu0 %v650
    %687 = vmatprep.subr.mxu0 0.0
    %688 = vmatpush1.msra.mxu0 %v649
    %689 = vmatprep.subr.mxu0 0.0
    %690 = vmatpush1.msra.mxu0 %v648
    %691 = vmatprep.subr.mxu0 0.0
    %692 = vmatpush1.msra.mxu0 %v647
    %693 = vmatprep.subr.mxu0 0.0
    %694 = vmatpush2.msra.mxu0 0.0
    %695 = vmatprep.subr.mxu0 0.0
    %696 = vmatpush2.msra.mxu0 0.0
    %697 = vmatprep.subr.mxu0 0.0
    %698 = vmatpush2.msra.mxu0 0.0
    %699 = vmatprep.subr.mxu0 0.0
    %700 = vmatpush2.msra.mxu0 0.0
    %701 = vmatprep.subr.mxu0 0.0
    %702 = vmatpush2.msra.mxu0 0.0
    %703 = vmatprep.subr.mxu0 0.0
    %704 = vmatpush2.msra.mxu0 0.0
    %705 = vmatprep.subr.mxu0 0.0
    %706 = vmatpush2.msra.mxu0 0.0
    %707 = vmatprep.subr.mxu0 0.0
    %708 = vmatpush2.msra.mxu0 0.0
    %709 = vmatprep.subr.mxu0 0.0
    %710 = vmatpush2.msra.mxu0 0.0
    %711 = vmatprep.subr.mxu0 0.0
    %712 = vmatpush2.msra.mxu0 0.0
    %713 = vmatprep.subr.mxu0 0.0
    %714 = vmatpush2.msra.mxu0 0.0
    %715 = vmatprep.subr.mxu0 0.0
    %716 = vmatpush2.msra.mxu0 0.0
    %717 = vmatprep.subr.mxu0 0.0
    %718 = vmatpush2.msra.mxu0 0.0
    %719 = vmatprep.subr.mxu0 0.0
    %720 = vmatpush2.msra.mxu0 0.0
    %721 = vmatprep.subr.mxu0 0.0
    %722 = vmatpush2.msra.mxu0 0.0
    %723 = vmatprep.subr.mxu0 0.0
    %724 = vmatpush2.msra.mxu0 0.0
    %725 = vmatprep.mubr.f32.mxu0 0.0
    %726 = vmatmul.mubr.f32.gmra.mxu0 %v659
    %v727 = vpop.f32.mrf.mxu0
    %v728 = vadd.f32 %v656, %v727
    %v729 = vpop.f32.mrf.mxu0
    %730 = vdwg.mxu0
    %vm731 = vcmask 74752
    %732 = vst.msk [vmem:[#allocation2] sm:$0x3] %vm731, %v728
    // Predicated region
    $region22: #{rnn_forward.1} parent=1 // pred_check
      _
    $region23: #{rnn_forward.1} parent=1 // pred_check_branch
      %734 = sbr.rel (0) target = $region25
    $region24: #{rnn_forward.1} parent=1 // pred_region
      %s736 = ssub.s32 32, 32
      %737 = vsyncadd [#allocation3], %s736
      %s739 = sshll.u32 [#allocation2], 4
      %s740 = int_to_ptr.vmem [resolvable:$true] %s739
      %742 = dma.vmem_to_hbm [thread:$0]  %s740, 32, %s5, [#allocation3]
    $region25: #{rnn_forward.1} parent=1 // pred_fallthru
      _
    // Predicated region
    $region26: #{rnn_forward.1} parent=1 // pred_check
      _
    $region27: #{rnn_forward.1} parent=1 // pred_check_branch
      %744 = sbr.rel (0) target = $region29
    $region28: #{rnn_forward.1} parent=1 // pred_region
      %s746 = ssub.s32 32, 32
      %747 = vsyncadd [#allocation5], %s746
      %s749 = sshll.u32 [#allocation4], 4
      %s750 = int_to_ptr.vmem [resolvable:$true] %s749
      %752 = dma.vmem_to_hbm [thread:$0]  %s750, 32, %s6, [#allocation5]
    $region29: #{rnn_forward.1} parent=1 // pred_fallthru
      _
    // Predicated region
    $region30: #{rnn_forward.1} parent=1 // pred_check
      _
    $region31: #{rnn_forward.1} parent=1 // pred_check_branch
      %754 = sbr.rel (0) target = $region33
    $region32: #{rnn_forward.1} parent=1 // pred_region
      %755 = dma.done [#allocation3], 32
    $region33: #{rnn_forward.1} parent=1 // pred_fallthru
      _
    // Predicated region
    $region34: #{rnn_forward.1} parent=1 // pred_check
      _
    $region35: #{rnn_forward.1} parent=1 // pred_check_branch
      %757 = sbr.rel (0) target = $region37
    $region36: #{rnn_forward.1} parent=1 // pred_region
      %758 = dma.done [#allocation5], 32
    $region37: #{rnn_forward.1} parent=1 // pred_fallthru
      _
    %759 = vsyncpa [#allocation3], 1
    %760 = vsyncpa [#allocation5], 1

</llo_original>
